<compile_context>
chip_gen: v7x
topology: tpu7x:2x2x1
jax: 0.10.0
libtpu: 0.0.40
codegen_flags: <defaults>
</compile_context>

<pallas_src>
import math

import jax
import jax.numpy as jnp
from jax import lax
from jax.experimental import pallas as pl
from jax.experimental.pallas import tpu as pltpu

_EPS = 1e-12  # matches torch.nn.functional.normalize default eps


def _round_up(x: int, m: int) -> int:
    return ((x + m - 1) // m) * m


def _arc_margin_kernel(x_ref, w_ref, inv_wn_ref, o_ref):
    # x_ref:      (TB, D)  feature tile (native dtype)
    # w_ref:      (TN, D)  raw (un-normalized) weight tile (native dtype)
    # inv_wn_ref: (1, TN)  precomputed 1 / max(||w_row||, eps), f32
    # o_ref:      (TB, TN) cosine tile
    x = x_ref[...]

    # Row-wise feature normalization factor, f32 math, rsqrt -> EUP.
    xf = x.astype(jnp.float32)
    sumsq = jnp.sum(xf * xf, axis=-1, keepdims=True)          # (TB, 1)
    inv_xn = lax.rsqrt(jnp.maximum(sumsq, _EPS * _EPS))        # == 1/max(||x||, eps)

    # MXU matmul contracting the last dim of both operands (no transpose),
    # f32 accumulation regardless of input dtype.
    dot = lax.dot_general(
        x,
        w_ref[...],
        dimension_numbers=(((1,), (1,)), ((), ())),
        preferred_element_type=jnp.float32,
    )                                                          # (TB, TN) f32

    # Fold both normalizations into the (much smaller) output tile.
    o_ref[...] = (dot * inv_xn * inv_wn_ref[...]).astype(o_ref.dtype)


def arc_margin_product(
    features: jax.Array, weight: jax.Array, *, tb: int = 128, tn: int = 512
) -> jax.Array:
    """cosine = normalize(features) @ normalize(weight).T via a tiled Pallas TPU kernel."""
    B, D = features.shape
    N, Dw = weight.shape
    assert D == Dw, "in_features mismatch"

    # Clamp tiles to the (padded) problem size, keeping sublane/lane alignment.
    tb = max(8, min(tb, _round_up(B, 8)))
    tb -= tb % 8
    tn = max(128, min(tn, _round_up(N, 128)))
    tn -= tn % 128

    B_pad = _round_up(B, tb)
    N_pad = _round_up(N, tn)
    D_pad = _round_up(D, 128)

    # Zero-padding does not change row norms or dot products; padded output
    # rows/cols are sliced off at the end.
    x_p = jnp.pad(features, ((0, B_pad - B), (0, D_pad - D)))
    w_p = jnp.pad(weight, ((0, N_pad - N), (0, D_pad - D)))

    # Precompute weight inverse norms once (outside the B-tile loop).
    w_f32 = w_p.astype(jnp.float32)
    inv_wn = lax.rsqrt(
        jnp.maximum(jnp.sum(w_f32 * w_f32, axis=-1), _EPS * _EPS)
    ).reshape(1, N_pad)

    grid = (B_pad // tb, N_pad // tn)

    out = pl.pallas_call(
        _arc_margin_kernel,
        out_shape=jax.ShapeDtypeStruct((B_pad, N_pad), features.dtype),
        grid_spec=pltpu.PrefetchScalarGridSpec(
            num_scalar_prefetch=0,
            grid=grid,
            in_specs=[
                pl.BlockSpec((tb, D_pad), lambda i, j: (i, 0)),   # features tile
                pl.BlockSpec((tn, D_pad), lambda i, j: (j, 0)),   # weight tile (raw)
                pl.BlockSpec((1, tn), lambda i, j: (0, j)),       # 1/||w|| row tile
            ],
            out_specs=pl.BlockSpec((tb, tn), lambda i, j: (i, j)),
        ),
        compiler_params=pltpu.CompilerParams(
            dimension_semantics=("parallel", "parallel"),
        ),
    )(x_p, w_p, inv_wn)

    return out[:B, :N]


def init_arc_margin_weight(key, in_features: int, out_features: int) -> jax.Array:
    """Equivalent of reset_parameters(): U(-stdv, stdv), stdv = 1/sqrt(in_features)."""
    stdv = 1.0 / math.sqrt(in_features)
    return jax.random.uniform(
        key, (out_features, in_features), dtype=jnp.float32, minval=-stdv, maxval=stdv
    )


def _reference(features, weight):
    xn = features / jnp.maximum(jnp.linalg.norm(features, axis=-1, keepdims=True), _EPS)
    wn = weight / jnp.maximum(jnp.linalg.norm(weight, axis=-1, keepdims=True), _EPS)
    return xn @ wn.T


if __name__ == "__main__":
    # Small, deliberately non-aligned shapes to exercise padding + a 2x2 grid.
    in_features = 96
    out_features = 500
    batch = 10

    key = jax.random.PRNGKey(0)
    k_feat, k_w = jax.random.split(key)

    features = jax.random.normal(k_feat, (batch, in_features), dtype=jnp.float32)
    weight = init_arc_margin_weight(k_w, in_features, out_features)

    cosine = arc_margin_product(features, weight, tb=8, tn=256)
    jax.block_until_ready(cosine)

    ref = _reference(features, weight)
    assert cosine.shape == (batch, out_features)
    assert jnp.allclose(cosine, ref, atol=1e-5, rtol=1e-5), "mismatch vs reference"

    print("KERNEL_OK")
</pallas_src>

<mosaic_0001>
module attributes {stable_mosaic.version = 11 : i64} {
  func.func @_arc_margin_kernel(%arg0: i32, %arg1: i32, %arg2: memref<8x128xf32, #tpu.memory_space<vmem>>, %arg3: memref<256x128xf32, #tpu.memory_space<vmem>>, %arg4: memref<1x256xf32, #tpu.memory_space<vmem>>, %arg5: memref<8x256xf32, #tpu.memory_space<vmem>>) attributes {dimension_semantics = [#tpu.dimension_semantics<parallel>, #tpu.dimension_semantics<parallel>], iteration_bounds = array<i64: 2, 2>, scalar_prefetch = 0 : i64, scratch_operands = 0 : i64, tpu.core_type = #tpu.core_type<tc>, window_params = [{transform_indices = @transform_0, window_bounds = array<i64: 8, 128>}, {transform_indices = @transform_1, window_bounds = array<i64: 256, 128>}, {transform_indices = @transform_2, window_bounds = array<i64: 1, 256>}, {transform_indices = @transform_3, window_bounds = array<i64: 8, 256>}]} {
    %c0 = arith.constant 0 : index
    %c0_0 = arith.constant 0 : index
    %0 = vector.load %arg2[%c0, %c0_0] : memref<8x128xf32, #tpu.memory_space<vmem>>, vector<8x128xf32>
    %1 = arith.mulf %0, %0 : vector<8x128xf32>
    %cst = arith.constant dense<0.000000e+00> : vector<8xf32>
    %2 = vector.multi_reduction <add>, %1, %cst [1] : vector<8x128xf32> to vector<8xf32>
    %3 = vector.shape_cast %2 : vector<8xf32> to vector<8x1xf32>
    %cst_1 = arith.constant 1.000000e-24 : f32
    %4 = vector.broadcast %cst_1 : f32 to vector<8x1xf32>
    %5 = arith.maximumf %3, %4 : vector<8x1xf32>
    %6 = math.rsqrt %5 : vector<8x1xf32>
    %c0_2 = arith.constant 0 : index
    %c0_3 = arith.constant 0 : index
    %7 = vector.load %arg3[%c0_2, %c0_3] : memref<256x128xf32, #tpu.memory_space<vmem>>, vector<256x128xf32>
    %cst_4 = arith.constant dense<0.000000e+00> : vector<8x256xf32>
    %8 = tpu.matmul %0, %7, %cst_4 {dimension_numbers = #tpu.dot_dimension_numbers<[1], [1], [0], [0], [0, 0, 1, 0], [], []>} : vector<8x128xf32>, vector<256x128xf32>, vector<8x256xf32> -> vector<8x256xf32>
    %9 = vector.broadcast %6 : vector<8x1xf32> to vector<8x256xf32>
    %10 = arith.mulf %8, %9 : vector<8x256xf32>
    %c0_5 = arith.constant 0 : index
    %c0_6 = arith.constant 0 : index
    %11 = vector.load %arg4[%c0_5, %c0_6] : memref<1x256xf32, #tpu.memory_space<vmem>>, vector<1x256xf32>
    %12 = vector.broadcast %11 : vector<1x256xf32> to vector<8x256xf32>
    %13 = arith.mulf %10, %12 : vector<8x256xf32>
    %c0_7 = arith.constant 0 : index
    %c0_8 = arith.constant 0 : index
    %14 = vector.load %arg5[%c0_7, %c0_8] : memref<8x256xf32, #tpu.memory_space<vmem>>, vector<8x256xf32>
    tpu.vector_store %arg5[%c0_7, %c0_8], %13 {strides = array<i32>} : memref<8x256xf32, #tpu.memory_space<vmem>>, vector<8x256xf32>,
    return
  }
  func.func @transform_0(%arg0: i32, %arg1: i32) -> (i32, i32) {
    %c0_i32 = arith.constant 0 : i32
    %c0_i32_0 = arith.constant 0 : i32
    return %arg0, %c0_i32 : i32, i32
  }
  func.func @transform_1(%arg0: i32, %arg1: i32) -> (i32, i32) {
    %c0_i32 = arith.constant 0 : i32
    %c0_i32_0 = arith.constant 0 : i32
    return %arg1, %c0_i32 : i32, i32
  }
  func.func @transform_2(%arg0: i32, %arg1: i32) -> (i32, i32) {
    %c0_i32 = arith.constant 0 : i32
    %c0_i32_0 = arith.constant 0 : i32
    return %c0_i32, %arg1 : i32, i32
  }
  func.func @transform_3(%arg0: i32, %arg1: i32) -> (i32, i32) {
    %c0_i32 = arith.constant 0 : i32
    return %arg0, %arg1 : i32, i32
  }
}

</mosaic_0001>

<llo_original>
// kernel: tpu_custom_call.1
$region0: #{tpu_custom_call.1}
  #allocation0 [shape = 'u32[]', space=smem, size = 0x4, offset = 0x4, fixed_abs, tag = 'smem constant byte address 0x4 - core index']
  #allocation1 [shape = 'u32[144,128]{1,0:T(1,128)}', space=vmem, size = 0x12000, scoped, tag = 'internal scratch']
  %s0 = inlined_call_operand.hbm [shape: f32[16,128], index: 0, kind: input, shape index: {}]
  %s1 = inlined_call_operand.hbm [shape: f32[512,128], index: 1, kind: input, shape index: {}]
  %s2 = inlined_call_operand.vmem [shape: f32[1,512], index: 2, kind: input, shape index: {}]
  %s3 = inlined_call_operand.hbm [shape: f32[16,512], index: 3, kind: output, shape index: {}]
  %s4 = sld [smem:[#allocation0]]
  $region53: #{tpu_custom_call.1} parent=0
    _
  %s6 = ssub.s32 1, %s4
  %s7 = scalar_select 0, %s6, %s4
  $region1: #{tpu_custom_call.1} parent=0
    #allocation2 [shape = 'u8[8192]{0}', space=vmem, size = 0x2000, scoped, tag = 'input window, operand 0']
    #allocation3 [shape = 's32[2]{0}', space=sflag, size = 0x8, scoped, tag = 'scoped memory for tpu_custom_call.1']
    #allocation4 [shape = 's32[2]{0}', space=sflag, size = 0x8, scoped, tag = 'scoped memory for tpu_custom_call.1']
    #allocation5 [shape = 'u8[262144]{0}', space=vmem, size = 0x40000, scoped, tag = 'input window, operand 1']
    #allocation6 [shape = 's32[2]{0}', space=sflag, size = 0x8, scoped, tag = 'scoped memory for tpu_custom_call.1']
    #allocation7 [shape = 'u8[16384]{0}', space=vmem, size = 0x4000, scoped, tag = 'output window, operand 0']
    %8 = vsyncpa [#allocation3], 0
    %s9 = scalar_lea.sflag [#allocation3], 1
    %10 = vsyncpa %s9, 0
    %11 = vsyncpa [#allocation6], 0
    %s12 = scalar_lea.sflag [#allocation6], 1
    %13 = vsyncpa %s12, 0
    %14 = vsyncpa [#allocation4], 0
    %s15 = scalar_lea.sflag [#allocation4], 1
    %16 = vsyncpa %s15, 0
    loop: start=0, step=1, limit=6
    $region2: #{tpu_custom_call.1} parent=1 // loop_pre_header
      _
    $region3: #{tpu_custom_call.1} parent=1 // loop_header
      %s18 = sphi 0, %s22
      %p19 = scmp.ge.s32.totalorder %s18, 6
      %s25 = sphi 0, %s37
      %s26 = sphi 0, %s33
      %s27 = sphi 0, %s25
      %s28 = sphi 0, %s26
      %s29 = sphi 0, %s27
      %s30 = sphi 0, %s28
      %s40 = sphi 0, %s42
      %s43 = sphi 0, %s40
      %s44 = sphi 0, %s43
      %s60 = sphi 0, %s44
      %s66 = sphi 0, %s68
      %s69 = sphi 0, %s66
      %s70 = sphi 0, %s69
      %s86 = sphi 0, %s70
      %s92 = sphi 0, %s94
      %s95 = sphi 0, %s92
      %s96 = sphi 0, %s95
      %s112 = sphi 0, %s96
      %s120 = sphi 0, %s122
      %s123 = sphi 0, %s120
      %s124 = sphi 0, %s123
      %s140 = sphi 0, %s124
    $region4: #{tpu_custom_call.1} parent=1 // loop_header_branch
      %21 = sbr.rel (%p19) target = $region8
    $region5: #{tpu_custom_call.1} parent=1 // loop_body
      %s23 = ssub.s32 %s18, 1
      %s24 = ssub.s32 %s18, 2
      %s31 = sadd.s32 1, %s26
      %p32 = scmp.ge.s32.totalorder %s31, 2
      %s33 = scalar_select %p32, 0, %s31
      %s34 = sadd.s32 1, %s25
      %s35 = scalar_select %p32, %s34, %s25
      %p36 = scmp.ge.s32.totalorder %s35, 2
      %s37 = scalar_select %p36, 0, %s35
      %s38 = ssub.s32 %s25, %s37
      %p39 = scmp.eq.s32.totalorder %s38, 0
      %s41 = sadd.s32 %s40, 1
      %s42 = scalar_select %p39, %s40, %s41
      %p45 = pneg %p39
      %p46 = scmp.eq.s32.totalorder %s18, 3
      %p47 = por %p45, %p46
      %p48 = scmp.ne.s32.totalorder %s40, %s43
      %p49 = scmp.eq.s32.totalorder %s18, 0
      %p50 = por %p48, %p49
      %p51 = scmp.ne.s32.totalorder %s40, %s43
      %p52 = scmp.eq.s32.totalorder %s23, 3
      %p53 = por %p51, %p52
      %p54 = scmp.ne.s32.totalorder %s43, %s44
      %p55 = scmp.eq.s32.totalorder %s23, 0
      %p56 = por %p54, %p55
      %p57 = scmp.ne.s32.totalorder %s43, %s44
      %p58 = scmp.eq.s32.totalorder %s24, 3
      %p59 = por %p57, %p58
      %p61 = scmp.ne.s32.totalorder %s44, %s60
      %p62 = scmp.eq.s32.totalorder %s24, 0
      %p63 = por %p61, %p62
      %s64 = ssub.s32 %s26, %s33
      %p65 = scmp.eq.s32.totalorder %s64, 0
      %s67 = sadd.s32 %s66, 1
      %s68 = scalar_select %p65, %s66, %s67
      %p71 = pneg %p65
      %p72 = scmp.eq.s32.totalorder %s18, 3
      %p73 = por %p71, %p72
      %p74 = scmp.ne.s32.totalorder %s66, %s69
      %p75 = scmp.eq.s32.totalorder %s18, 0
      %p76 = por %p74, %p75
      %p77 = scmp.ne.s32.totalorder %s66, %s69
      %p78 = scmp.eq.s32.totalorder %s23, 3
      %p79 = por %p77, %p78
      %p80 = scmp.ne.s32.totalorder %s69, %s70
      %p81 = scmp.eq.s32.totalorder %s23, 0
      %p82 = por %p80, %p81
      %p83 = scmp.ne.s32.totalorder %s69, %s70
      %p84 = scmp.eq.s32.totalorder %s24, 3
      %p85 = por %p83, %p84
      %p87 = scmp.ne.s32.totalorder %s70, %s86
      %p88 = scmp.eq.s32.totalorder %s24, 0
      %p89 = por %p87, %p88
      %s90 = ssub.s32 %s26, %s33
      %p91 = scmp.eq.s32.totalorder %s90, 0
      %s93 = sadd.s32 %s92, 1
      %s94 = scalar_select %p91, %s92, %s93
      %p97 = pneg %p91
      %p98 = scmp.eq.s32.totalorder %s18, 3
      %p99 = por %p97, %p98
      %p100 = scmp.ne.s32.totalorder %s92, %s95
      %p101 = scmp.eq.s32.totalorder %s18, 0
      %p102 = por %p100, %p101
      %p103 = scmp.ne.s32.totalorder %s92, %s95
      %p104 = scmp.eq.s32.totalorder %s23, 3
      %p105 = por %p103, %p104
      %p106 = scmp.ne.s32.totalorder %s95, %s96
      %p107 = scmp.eq.s32.totalorder %s23, 0
      %p108 = por %p106, %p107
      %p109 = scmp.ne.s32.totalorder %s95, %s96
      %p110 = scmp.eq.s32.totalorder %s24, 3
      %p111 = por %p109, %p110
      %p113 = scmp.ne.s32.totalorder %s96, %s112
      %p114 = scmp.eq.s32.totalorder %s24, 0
      %p115 = por %p113, %p114
      %s116 = ssub.s32 %s25, %s37
      %s117 = ssub.s32 %s26, %s33
      %s118 = sor.u32 %s116, %s117
      %p119 = scmp.eq.s32.totalorder %s118, 0
      %s121 = sadd.s32 %s120, 1
      %s122 = scalar_select %p119, %s120, %s121
      %p125 = pneg %p119
      %p126 = scmp.eq.s32.totalorder %s18, 3
      %p127 = por %p125, %p126
      %p128 = scmp.ne.s32.totalorder %s120, %s123
      %p129 = scmp.eq.s32.totalorder %s18, 0
      %p130 = por %p128, %p129
      %p131 = scmp.ne.s32.totalorder %s120, %s123
      %p132 = scmp.eq.s32.totalorder %s23, 3
      %p133 = por %p131, %p132
      %p134 = scmp.ne.s32.totalorder %s123, %s124
      %p135 = scmp.eq.s32.totalorder %s23, 0
      %p136 = por %p134, %p135
      %p137 = scmp.ne.s32.totalorder %s123, %s124
      %p138 = scmp.eq.s32.totalorder %s24, 3
      %p139 = por %p137, %p138
      %p141 = scmp.ne.s32.totalorder %s124, %s140
      %p142 = scmp.eq.s32.totalorder %s24, 0
      %p143 = por %p141, %p142
      %p144 = scmp.le.s32.totalorder 1, %s18
      %p145 = scmp.lt.s32.totalorder %s18, 5
      %p146 = pnand %p144, %p145
      %p147 = pneg %p146
      // Predicated region
      $region9: #{tpu_custom_call.1} parent=5 // pred_check
        _
      $region10: #{tpu_custom_call.1} parent=5 // pred_check_branch
        %149 = sbr.rel (%p146) target = $region12
      $region11: #{tpu_custom_call.1} parent=5 // pred_region
        %s150 = ssub.s32 %s18, 1
      $region12: #{tpu_custom_call.1} parent=5 // pred_fallthru
        _
      %p151 = scmp.lt.s32.totalorder %s18, 4
      // Predicated region
      $region13: #{tpu_custom_call.1} parent=5 // pred_check
        %p152 = pneg %p151
      $region14: #{tpu_custom_call.1} parent=5 // pred_check_branch
        %154 = sbr.rel (%p152) target = $region16
      $region15: #{tpu_custom_call.1} parent=5 // pred_region
        // Predicated region
        $region17: #{tpu_custom_call.1} parent=15 // pred_check
          %p155 = pneg %p50
        $region18: #{tpu_custom_call.1} parent=15 // pred_check_branch
          %157 = sbr.rel (%p155) target = $region20
        $region19: #{tpu_custom_call.1} parent=15 // pred_region
          %s158 = sand.u32 %s40, 1
          %s159 = scalar_lea.sflag [#allocation3], %s158
          %s160 = sand.u32 %s40, 1
          %s161 = smul.addr %s160, 8
          %s162 = scalar_lea.vmem [#allocation2], %s161
          %s164 = ssub.s32 128, 128
          %165 = vsyncadd %s159, %s164
          %s166 = smul.addr %s25, 128
          %s167 = scalar_lea.hbm %s0, %s166
          %s169 = sshll.u32 %s162, 4
          %s170 = int_to_ptr.vmem [resolvable:$true] %s169
          %172 = dma.hbm_to_vmem [thread:$0]  %s167, 128, %s170, %s159
        $region20: #{tpu_custom_call.1} parent=15 // pred_fallthru
          _
        // Predicated region
        $region21: #{tpu_custom_call.1} parent=15 // pred_check
          %p173 = pneg %p76
        $region22: #{tpu_custom_call.1} parent=15 // pred_check_branch
          %175 = sbr.rel (%p173) target = $region24
        $region23: #{tpu_custom_call.1} parent=15 // pred_region
          %s176 = sand.u32 %s66, 1
          %s177 = scalar_lea.sflag [#allocation6], %s176
          %s178 = sand.u32 %s66, 1
          %s179 = smul.addr %s178, 256
          %s180 = scalar_lea.vmem [#allocation5], %s179
          %s181 = smul.u32 32, %s26
          %s183 = ssub.s32 4096, 4096
          %184 = vsyncadd %s177, %s183
          %s185 = smul.addr %s181, 128
          %s186 = scalar_lea.hbm %s1, %s185
          %s187 = sshll.u32 %s180, 4
          %s188 = int_to_ptr.vmem [resolvable:$true] %s187
          %193 = dma.hbm_to_vmem [thread:$0]  %s186, 4096, %s188, %s177, 128, 128, 8
        $region24: #{tpu_custom_call.1} parent=15 // pred_fallthru
          _
        // Predicated region
        $region25: #{tpu_custom_call.1} parent=15 // pred_check
          %p194 = pneg %p102
        $region26: #{tpu_custom_call.1} parent=15 // pred_check_branch
          %196 = sbr.rel (%p194) target = $region28
        $region27: #{tpu_custom_call.1} parent=15 // pred_region
          %s197 = smul.u32 2, %s26
          %p198 = scmp.lt.s32.totalorder %s197, 3
          %s199 = scalar_select %p198, %s197, 3
          %s200 = scalar_lea.vmem %s2, %s199
          %s201 = smul.u32 2, %s26
        $region28: #{tpu_custom_call.1} parent=15 // pred_fallthru
          _
      $region16: #{tpu_custom_call.1} parent=5 // pred_fallthru
        _
      %p202 = scmp.le.s32.totalorder 1, %s18
      %p203 = scmp.lt.s32.totalorder %s18, 5
      %p204 = pnand %p202, %p203
      %p205 = pneg %p204
      // Predicated region
      $region29: #{tpu_custom_call.1} parent=5 // pred_check
        _
      $region30: #{tpu_custom_call.1} parent=5 // pred_check_branch
        %207 = sbr.rel (%p204) target = $region32
      $region31: #{tpu_custom_call.1} parent=5 // pred_region
        %s208 = ssub.s32 %s18, 1
        %s209 = sand.u32 %s43, 1
        %s210 = scalar_lea.sflag [#allocation3], %s209
        %s211 = sand.u32 %s43, 1
        %s212 = smul.addr %s211, 8
        %s213 = scalar_lea.vmem [#allocation2], %s212
        // Predicated region
        $region33: #{tpu_custom_call.1} parent=31 // pred_check
          %p214 = pneg %p56
        $region34: #{tpu_custom_call.1} parent=31 // pred_check_branch
          %216 = sbr.rel (%p214) target = $region36
        $region35: #{tpu_custom_call.1} parent=31 // pred_region
          %217 = dma.done %s210, 128
        $region36: #{tpu_custom_call.1} parent=31 // pred_fallthru
          _
        %s218 = sand.u32 %s69, 1
        %s219 = scalar_lea.sflag [#allocation6], %s218
        %s220 = sand.u32 %s69, 1
        %s221 = smul.addr %s220, 256
        %s222 = scalar_lea.vmem [#allocation5], %s221
        // Predicated region
        $region37: #{tpu_custom_call.1} parent=31 // pred_check
          %p223 = pneg %p82
        $region38: #{tpu_custom_call.1} parent=31 // pred_check_branch
          %225 = sbr.rel (%p223) target = $region40
        $region39: #{tpu_custom_call.1} parent=31 // pred_region
          %226 = dma.done %s219, 4096
        $region40: #{tpu_custom_call.1} parent=31 // pred_fallthru
          _
        %s227 = sand.u32 %s43, 1
        %s228 = scalar_lea.sflag [#allocation3], %s227
        %s229 = sand.u32 %s43, 1
        %s230 = smul.addr %s229, 8
        %s231 = scalar_lea.vmem [#allocation2], %s230
        %p232 = pneg %p56
        %p233 = pneg %p53
        %s234 = sand.u32 %s69, 1
        %s235 = scalar_lea.sflag [#allocation6], %s234
        %s236 = sand.u32 %s69, 1
        %s237 = smul.addr %s236, 256
        %s238 = scalar_lea.vmem [#allocation5], %s237
        %p239 = pneg %p82
        %p240 = pneg %p79
        %s241 = smul.u32 2, %s28
        %p242 = scmp.lt.s32.totalorder %s241, 3
        %s243 = scalar_select %p242, %s241, 3
        %s244 = scalar_lea.vmem %s2, %s243
        %p245 = pneg %p108
        %p246 = pneg %p105
        %p247 = pneg %p136
        %p248 = pneg %p133
        %s249 = sand.u32 %s123, 1
        %s250 = scalar_lea.sflag [#allocation4], %s249
        %s251 = sand.u32 %s123, 1
        %s252 = smul.addr %s251, 16
        %s253 = scalar_lea.vmem [#allocation7], %s252
        %s254 = smul.u32 32, %s28
        %s255 = smul.u32 2, %s28
        %p256 = scmp.lt.s32.totalorder %s255, 3
        %s257 = scalar_select %p256, %s255, 3
        %s258 = scalar_lea.vmem %s2, %s257
        %s259 = smul.u32 2, %s28
        %s260 = smul.u32 2, %s28
        %v261 = vld [vmem:[%s213] sm:$0xff]
        %v262 = vmul.f32 %v261, %v261
        %263 = vadd.xlane.f32.xlu0 %v262
        %v264 = vpop.xlane.xlu0 %263
        %v265 = vmax.f32 %v264, 1e-24
        %v266 = vrsqrt.pop %v265
        %v267 = vld [vmem:[%s222] sm:$0xff]
        %v268 = vld [vmem:[%s222 + $0x8] sm:$0xff]
        %v269 = vld [vmem:[%s222 + $0x10] sm:$0xff]
        %v270 = vld [vmem:[%s222 + $0x18] sm:$0xff]
        %v271 = vld [vmem:[%s222 + $0x20] sm:$0xff]
        %v272 = vld [vmem:[%s222 + $0x28] sm:$0xff]
        %v273 = vld [vmem:[%s222 + $0x30] sm:$0xff]
        %v274 = vld [vmem:[%s222 + $0x38] sm:$0xff]
        %v275 = vld [vmem:[%s222 + $0x40] sm:$0xff]
        %v276 = vld [vmem:[%s222 + $0x48] sm:$0xff]
        %v277 = vld [vmem:[%s222 + $0x50] sm:$0xff]
        %v278 = vld [vmem:[%s222 + $0x58] sm:$0xff]
        %v279 = vld [vmem:[%s222 + $0x60] sm:$0xff]
        %v280 = vld [vmem:[%s222 + $0x68] sm:$0xff]
        %v281 = vld [vmem:[%s222 + $0x70] sm:$0xff]
        %v282 = vld [vmem:[%s222 + $0x78] sm:$0xff]
        %v283 = vld [vmem:[%s222 + $0x80] sm:$0xff]
        %v284 = vld [vmem:[%s222 + $0x88] sm:$0xff]
        %v285 = vld [vmem:[%s222 + $0x90] sm:$0xff]
        %v286 = vld [vmem:[%s222 + $0x98] sm:$0xff]
        %v287 = vld [vmem:[%s222 + $0xa0] sm:$0xff]
        %v288 = vld [vmem:[%s222 + $0xa8] sm:$0xff]
        %v289 = vld [vmem:[%s222 + $0xb0] sm:$0xff]
        %v290 = vld [vmem:[%s222 + $0xb8] sm:$0xff]
        %v291 = vld [vmem:[%s222 + $0xc0] sm:$0xff]
        %v292 = vld [vmem:[%s222 + $0xc8] sm:$0xff]
        %v293 = vld [vmem:[%s222 + $0xd0] sm:$0xff]
        %v294 = vld [vmem:[%s222 + $0xd8] sm:$0xff]
        %v295 = vld [vmem:[%s222 + $0xe0] sm:$0xff]
        %v296 = vld [vmem:[%s222 + $0xe8] sm:$0xff]
        %v297 = vld [vmem:[%s222 + $0xf0] sm:$0xff]
        %v298 = vld [vmem:[%s222 + $0xf8] sm:$0xff]
        %299 = vmatprep.subr.mxu0 0.0
        %300 = vmatpush1.xpose.msra.mxu0 %v267
        %301 = vmatprep.subr.mxu0 0.0
        %302 = vmatpush1.xpose.msra.mxu0 %v268
        %303 = vmatprep.subr.mxu0 0.0
        %304 = vmatpush1.xpose.msra.mxu0 %v269
        %305 = vmatprep.subr.mxu0 0.0
        %306 = vmatpush1.xpose.msra.mxu0 %v270
        %307 = vmatprep.subr.mxu0 0.0
        %308 = vmatpush1.xpose.msra.mxu0 %v271
        %309 = vmatprep.subr.mxu0 0.0
        %310 = vmatpush1.xpose.msra.mxu0 %v272
        %311 = vmatprep.subr.mxu0 0.0
        %312 = vmatpush1.xpose.msra.mxu0 %v273
        %313 = vmatprep.subr.mxu0 0.0
        %314 = vmatpush1.xpose.msra.mxu0 %v274
        %315 = vmatprep.subr.mxu0 0.0
        %316 = vmatpush1.xpose.msra.mxu0 %v275
        %317 = vmatprep.subr.mxu0 0.0
        %318 = vmatpush1.xpose.msra.mxu0 %v276
        %319 = vmatprep.subr.mxu0 0.0
        %320 = vmatpush1.xpose.msra.mxu0 %v277
        %321 = vmatprep.subr.mxu0 0.0
        %322 = vmatpush1.xpose.msra.mxu0 %v278
        %323 = vmatprep.subr.mxu0 0.0
        %324 = vmatpush1.xpose.msra.mxu0 %v279
        %325 = vmatprep.subr.mxu0 0.0
        %326 = vmatpush1.xpose.msra.mxu0 %v280
        %327 = vmatprep.subr.mxu0 0.0
        %328 = vmatpush1.xpose.msra.mxu0 %v281
        %329 = vmatprep.subr.mxu0 0.0
        %330 = vmatpush1.xpose.msra.mxu0 %v282
        %331 = vmatprep.subr.mxu0 0.0
        %332 = vmatpush1.xpose.msra.mxu0 %v283
        %333 = vmatprep.subr.mxu0 0.0
        %334 = vmatpush1.xpose.msra.mxu0 %v284
        %335 = vmatprep.subr.mxu0 0.0
        %336 = vmatpush1.xpose.msra.mxu0 %v285
        %337 = vmatprep.subr.mxu0 0.0
        %338 = vmatpush1.xpose.msra.mxu0 %v286
        %339 = vmatprep.subr.mxu0 0.0
        %340 = vmatpush1.xpose.msra.mxu0 %v287
        %341 = vmatprep.subr.mxu0 0.0
        %342 = vmatpush1.xpose.msra.mxu0 %v288
        %343 = vmatprep.subr.mxu0 0.0
        %344 = vmatpush1.xpose.msra.mxu0 %v289
        %345 = vmatprep.subr.mxu0 0.0
        %346 = vmatpush1.xpose.msra.mxu0 %v290
        %347 = vmatprep.subr.mxu0 0.0
        %348 = vmatpush1.xpose.msra.mxu0 %v291
        %349 = vmatprep.subr.mxu0 0.0
        %350 = vmatpush1.xpose.msra.mxu0 %v292
        %351 = vmatprep.subr.mxu0 0.0
        %352 = vmatpush1.xpose.msra.mxu0 %v293
        %353 = vmatprep.subr.mxu0 0.0
        %354 = vmatpush1.xpose.msra.mxu0 %v294
        %355 = vmatprep.subr.mxu0 0.0
        %356 = vmatpush1.xpose.msra.mxu0 %v295
        %357 = vmatprep.subr.mxu0 0.0
        %358 = vmatpush1.xpose.msra.mxu0 %v296
        %359 = vmatprep.subr.mxu0 0.0
        %360 = vmatpush1.xpose.msra.mxu0 %v297
        %361 = vmatprep.subr.mxu0 0.0
        %362 = vmatpush1.xpose.msra.mxu0 %v298
        %363 = vmatprep.mubr.f32.mxu0 0.0
        %364 = vmatmul.mubr.f32.gmra.mrb[0].mxu0 %v261
        %v365 = vpop.f32.mrb[0].mxu0
        %v366 = vadd.f32 0.0, %v365
        %v367 = vpop.f32.mrb[0].mxu0
        %v368 = vadd.f32 0.0, %v367
        %369 = vdwg.mxu0
        %v370 = vmul.f32 %v366, %v266
        %v371 = vmul.f32 %v368, %v266
        %v372 = vld [vmem:[%s258] sm:$0x3]
        %v374 = vlaneseq
        %v375 = vshrl.u32 %v374, 7
        %v376 = vsub.s32 0, %v375
        %v377 = vrot.slane %v372, %v376
        %v378 = vlaneseq
        %v379 = vshrl.u32 %v378, 7
        %v380 = vsub.s32 1, %v379
        %v381 = vrot.slane %v372, %v380
        %v384 = vmul.f32 %v370, %v377
        %v385 = vmul.f32 %v371, %v381
        %386 = vst [vmem:[%s253] sm:$0xff] %v384
        %387 = vst [vmem:[%s253 + $0x8] sm:$0xff] %v385
        %s388 = sand.u32 %s123, 1
        %s389 = scalar_lea.sflag [#allocation4], %s388
        %s390 = sand.u32 %s123, 1
        %s391 = smul.addr %s390, 16
        %s392 = scalar_lea.vmem [#allocation7], %s391
        // Predicated region
        $region41: #{tpu_custom_call.1} parent=31 // pred_check
          %p393 = pneg %p133
        $region42: #{tpu_custom_call.1} parent=31 // pred_check_branch
          %395 = sbr.rel (%p393) target = $region44
        $region43: #{tpu_custom_call.1} parent=31 // pred_region
          %s396 = smul.u32 2, %s28
          %s398 = ssub.s32 256, 256
          %399 = vsyncadd %s389, %s398
          %s400 = smul.addr %s27, 4
          %s401 = sadd.s32 %s396, %s400
          %s402 = smul.addr %s401, 128
          %s403 = scalar_lea.hbm %s3, %s402
          %s405 = sshll.u32 %s392, 4
          %s406 = int_to_ptr.vmem [resolvable:$true] %s405
          %408 = dma.vmem_to_hbm [thread:$0]  %s406, 256, %s403, %s389
        $region44: #{tpu_custom_call.1} parent=31 // pred_fallthru
          _
      $region32: #{tpu_custom_call.1} parent=5 // pred_fallthru
        _
      %p409 = scmp.le.s32.totalorder 2, %s18
      // Predicated region
      $region45: #{tpu_custom_call.1} parent=5 // pred_check
        %p410 = pneg %p409
      $region46: #{tpu_custom_call.1} parent=5 // pred_check_branch
        %412 = sbr.rel (%p410) target = $region48
      $region47: #{tpu_custom_call.1} parent=5 // pred_region
        %s413 = ssub.s32 %s18, 2
        // Predicated region
        $region49: #{tpu_custom_call.1} parent=47 // pred_check
          %p414 = pneg %p139
        $region50: #{tpu_custom_call.1} parent=47 // pred_check_branch
          %416 = sbr.rel (%p414) target = $region52
        $region51: #{tpu_custom_call.1} parent=47 // pred_region
          %s417 = sand.u32 %s124, 1
          %s418 = scalar_lea.sflag [#allocation4], %s417
          %s419 = sand.u32 %s124, 1
          %s420 = smul.addr %s419, 16
          %s421 = scalar_lea.vmem [#allocation7], %s420
          %422 = dma.done %s418, 256
        $region52: #{tpu_custom_call.1} parent=47 // pred_fallthru
          _
      $region48: #{tpu_custom_call.1} parent=5 // pred_fallthru
        _
    $region6: #{tpu_custom_call.1} parent=1 // loop_footer
      %s22 = sadd.s32 1, %s18
    $region7: #{tpu_custom_call.1} parent=1 // loop_footer_branch
      %17 = sbr.rel target = $region3
    $region8: #{tpu_custom_call.1} parent=1 // loop_exit
      _
    %423 = vsyncpa [#allocation3], 1
    %s424 = scalar_lea.sflag [#allocation3], 1
    %425 = vsyncpa %s424, 1
    %426 = vsyncpa [#allocation6], 1
    %s427 = scalar_lea.sflag [#allocation6], 1
    %428 = vsyncpa %s427, 1
    %429 = vsyncpa [#allocation4], 1
    %s430 = scalar_lea.sflag [#allocation4], 1
    %431 = vsyncpa %s430, 1

</llo_original>
